<compile_context>
chip_gen: v5e
topology: v5e:2x2
jax: 0.10.0
libtpu: 0.0.40
codegen_flags: <defaults>
</compile_context>

<pallas_src>
import jax
import jax.numpy as jnp
from jax.experimental import pallas as pl
from jax.experimental.pallas import tpu as pltpu


def _prefix_mlp_kernel(x_ref, a_ref, b_ref, abias_ref, bbias_ref, o_ref):
    # x_ref:     (B, H, N, D)   native layout, full-array VMEM block
    # a_ref:     (H*D, H*R)     block-diagonal prefix_A (bf16)
    # b_ref:     (H*R, H*D)     block-diagonal prefix_B (bf16)
    # abias_ref: (1, H*R)       flattened A_bias (f32)
    # bbias_ref: (1, H*D)       flattened B_bias (f32)
    # o_ref:     (B, H, N, D)
    B, H, N, D = x_ref.shape

    # ---- in-kernel head merge: (B,H,N,D) -> (B*N, H*D), row = b*N + n -------
    # Static per-(b,h) slices; heads concatenated along lanes, batches along
    # sublanes.  Pure lane/sublane shuffles, no wrapper-side transpose.
    x_m = jnp.concatenate(
        [jnp.concatenate([x_ref[b, h, :, :] for h in range(H)], axis=-1)
         for b in range(B)],
        axis=0,
    ).astype(jnp.bfloat16)                                     # bf16 -> native MXU rate

    # h = tanh(x @ A_blk + A_bias)   -- MXU in bf16, accumulate f32
    h_act = jnp.dot(x_m, a_ref[...], preferred_element_type=jnp.float32)   # (M, H*R)
    h_act = jnp.tanh(h_act + abias_ref[...])                   # f32 bias add, EUP tanh

    # y = h @ B_blk + B_bias
    y = jnp.dot(h_act.astype(b_ref.dtype), b_ref[...],
                preferred_element_type=jnp.float32)             # (M, H*D)
    y = y + bbias_ref[...]

    # ---- in-kernel head un-merge: (B*N, H*D) -> (B, H, N, D) ----------------
    for b in range(B):
        for h in range(H):
            o_ref[b, h, :, :] = y[b * N:(b + 1) * N,
                                  h * D:(h + 1) * D].astype(o_ref.dtype)


def prepare_prefix_mlp_params(prefix_A, prefix_B, A_bias, B_bias,
                              compute_dtype=jnp.bfloat16):
    """Parameter-prep time (once per weight update), NOT per forward call.

    Builds block-diagonal merged-head weights in the MXU compute dtype and
    flattened f32 biases.

    prefix_A: (H, D, R); prefix_B: (H, R, D); A_bias: (H, 1, R); B_bias: (H, 1, D).
    """
    H, D, R = prefix_A.shape
    HD, HR = H * D, H * R
    eye = jnp.eye(H, dtype=jnp.float32)
    A_blk = jnp.einsum('hdr,hg->hdgr', prefix_A.astype(jnp.float32), eye)
    B_blk = jnp.einsum('hrd,hg->hrgd', prefix_B.astype(jnp.float32), eye)
    return (A_blk.reshape(HD, HR).astype(compute_dtype),
            B_blk.reshape(HR, HD).astype(compute_dtype),
            A_bias.reshape(1, HR).astype(jnp.float32),
            B_bias.reshape(1, HD).astype(jnp.float32))


def prefix_mlp_forward(x, prepared_params):
    """x: (B, H, N, D) in native layout. Returns (B, H, N, D). One pallas_call,
    no wrapper-side transposes/reshapes of x or y."""
    A_blk, B_blk, a_bias, b_bias = prepared_params
    B, H, N, D = x.shape
    HD, HR = A_blk.shape
    M = B * N

    isz = lambda a: jnp.dtype(a.dtype).itemsize
    cost = pl.CostEstimate(
        flops=4 * M * HD * HR,                 # dense block-diag dots (H x useful work)
        transcendentals=M * HR,                # tanh
        bytes_accessed=(2 * x.size * isz(x)
                        + A_blk.size * isz(A_blk) + B_blk.size * isz(B_blk)
                        + a_bias.size * isz(a_bias) + b_bias.size * isz(b_bias)),
    )

    # Single grid step: every operand is a full-array VMEM-resident block.
    return pl.pallas_call(
        _prefix_mlp_kernel,
        out_shape=jax.ShapeDtypeStruct((B, H, N, D), x.dtype),
        in_specs=[pl.BlockSpec(memory_space=pltpu.MemorySpace.VMEM)
                  for _ in range(5)],
        out_specs=pl.BlockSpec(memory_space=pltpu.MemorySpace.VMEM),
        cost_estimate=cost,
    )(x, A_blk, B_blk, a_bias, b_bias)


def truncated_gaussian(key, shape, std):
    # torch.fmod(torch.randn(shape), 2) * std
    return jnp.fmod(jax.random.normal(key, shape, dtype=jnp.float32), 2.0) * std


def prefix_mlp_reference(x, prefix_A, prefix_B, A_bias, B_bias):
    h = jnp.einsum('bhnd,hdr->bhnr', x, prefix_A) + A_bias
    h = jnp.tanh(h)
    y = jnp.einsum('bhnr,hrd->bhnd', h, prefix_B) + B_bias
    return y


if __name__ == "__main__":
    # Small shapes: batch=2, n_head=4, prefix/seq len=8, input_dim (head dim)=32, rank=8
    B, H, N, D, R = 2, 4, 8, 32, 8

    key = jax.random.PRNGKey(0)
    k_x, k_a, k_b, k_ab, k_bb = jax.random.split(key, 5)

    x = jax.random.normal(k_x, (B, H, N, D), dtype=jnp.float32)

    # Houlsby init: truncated gaussian, std=0.01 (deterministic via PRNGKey(0) splits)
    prefix_A = truncated_gaussian(k_a, (H, D, R), 0.01)
    prefix_B = truncated_gaussian(k_b, (H, R, D), 0.01)
    A_bias = truncated_gaussian(k_ab, (H, 1, R), 0.01)
    B_bias = truncated_gaussian(k_bb, (H, 1, D), 0.01)

    # Built once (parameter creation/update time), reused across forwards.
    prepared = prepare_prefix_mlp_params(prefix_A, prefix_B, A_bias, B_bias)
    prepared = jax.block_until_ready(prepared)

    out = prefix_mlp_forward(x, prepared)
    out = jax.block_until_ready(out)

    # sanity check vs pure-JAX f32 reference (bf16 MXU path -> widened tolerance)
    ref = prefix_mlp_reference(x, prefix_A, prefix_B, A_bias, B_bias)
    assert out.shape == (B, H, N, D)
    assert out.dtype == x.dtype
    assert jnp.allclose(out, ref, atol=1e-3, rtol=1e-2), \
        float(jnp.max(jnp.abs(out - ref)))

    print("KERNEL_OK")
</pallas_src>

<mosaic_0001>
module attributes {stable_mosaic.version = 11 : i64} {
  func.func @_prefix_mlp_kernel(%arg0: memref<2x4x8x32xf32, #tpu.memory_space<vmem>>, %arg1: memref<128x32xbf16, #tpu.memory_space<vmem>>, %arg2: memref<32x128xbf16, #tpu.memory_space<vmem>>, %arg3: memref<1x32xf32, #tpu.memory_space<vmem>>, %arg4: memref<1x128xf32, #tpu.memory_space<vmem>>, %arg5: memref<2x4x8x32xf32, #tpu.memory_space<vmem>>) attributes {dimension_semantics = [], scalar_prefetch = 0 : i64, scratch_operands = 0 : i64, tpu.core_type = #tpu.core_type<tc>} {
    %c0 = arith.constant 0 : index
    %c0_0 = arith.constant 0 : index
    %c0_1 = arith.constant 0 : index
    %c0_2 = arith.constant 0 : index
    %0 = vector.load %arg0[%c0, %c0_0, %c0_1, %c0_2] : memref<2x4x8x32xf32, #tpu.memory_space<vmem>>, vector<1x1x8x32xf32>
    %1 = vector.shape_cast %0 : vector<1x1x8x32xf32> to vector<8x32xf32>
    %c0_3 = arith.constant 0 : index
    %c1 = arith.constant 1 : index
    %c0_4 = arith.constant 0 : index
    %c0_5 = arith.constant 0 : index
    %2 = vector.load %arg0[%c0_3, %c1, %c0_4, %c0_5] : memref<2x4x8x32xf32, #tpu.memory_space<vmem>>, vector<1x1x8x32xf32>
    %3 = vector.shape_cast %2 : vector<1x1x8x32xf32> to vector<8x32xf32>
    %c0_6 = arith.constant 0 : index
    %c2 = arith.constant 2 : index
    %c0_7 = arith.constant 0 : index
    %c0_8 = arith.constant 0 : index
    %4 = vector.load %arg0[%c0_6, %c2, %c0_7, %c0_8] : memref<2x4x8x32xf32, #tpu.memory_space<vmem>>, vector<1x1x8x32xf32>
    %5 = vector.shape_cast %4 : vector<1x1x8x32xf32> to vector<8x32xf32>
    %c0_9 = arith.constant 0 : index
    %c3 = arith.constant 3 : index
    %c0_10 = arith.constant 0 : index
    %c0_11 = arith.constant 0 : index
    %6 = vector.load %arg0[%c0_9, %c3, %c0_10, %c0_11] : memref<2x4x8x32xf32, #tpu.memory_space<vmem>>, vector<1x1x8x32xf32>
    %7 = vector.shape_cast %6 : vector<1x1x8x32xf32> to vector<8x32xf32>
    %8 = tpu.concatenate %1, %3, %5, %7 in 1 : vector<8x32xf32>, vector<8x32xf32>, vector<8x32xf32>, vector<8x32xf32> -> vector<8x128xf32>
    %c1_12 = arith.constant 1 : index
    %c0_13 = arith.constant 0 : index
    %c0_14 = arith.constant 0 : index
    %c0_15 = arith.constant 0 : index
    %9 = vector.load %arg0[%c1_12, %c0_13, %c0_14, %c0_15] : memref<2x4x8x32xf32, #tpu.memory_space<vmem>>, vector<1x1x8x32xf32>
    %10 = vector.shape_cast %9 : vector<1x1x8x32xf32> to vector<8x32xf32>
    %c1_16 = arith.constant 1 : index
    %c1_17 = arith.constant 1 : index
    %c0_18 = arith.constant 0 : index
    %c0_19 = arith.constant 0 : index
    %11 = vector.load %arg0[%c1_16, %c1_17, %c0_18, %c0_19] : memref<2x4x8x32xf32, #tpu.memory_space<vmem>>, vector<1x1x8x32xf32>
    %12 = vector.shape_cast %11 : vector<1x1x8x32xf32> to vector<8x32xf32>
    %c1_20 = arith.constant 1 : index
    %c2_21 = arith.constant 2 : index
    %c0_22 = arith.constant 0 : index
    %c0_23 = arith.constant 0 : index
    %13 = vector.load %arg0[%c1_20, %c2_21, %c0_22, %c0_23] : memref<2x4x8x32xf32, #tpu.memory_space<vmem>>, vector<1x1x8x32xf32>
    %14 = vector.shape_cast %13 : vector<1x1x8x32xf32> to vector<8x32xf32>
    %c1_24 = arith.constant 1 : index
    %c3_25 = arith.constant 3 : index
    %c0_26 = arith.constant 0 : index
    %c0_27 = arith.constant 0 : index
    %15 = vector.load %arg0[%c1_24, %c3_25, %c0_26, %c0_27] : memref<2x4x8x32xf32, #tpu.memory_space<vmem>>, vector<1x1x8x32xf32>
    %16 = vector.shape_cast %15 : vector<1x1x8x32xf32> to vector<8x32xf32>
    %17 = tpu.concatenate %10, %12, %14, %16 in 1 : vector<8x32xf32>, vector<8x32xf32>, vector<8x32xf32>, vector<8x32xf32> -> vector<8x128xf32>
    %18 = tpu.concatenate %8, %17 in 0 : vector<8x128xf32>, vector<8x128xf32> -> vector<16x128xf32>
    %19 = arith.truncf %18 : vector<16x128xf32> to vector<16x128xbf16>
    %c0_28 = arith.constant 0 : index
    %c0_29 = arith.constant 0 : index
    %20 = vector.load %arg1[%c0_28, %c0_29] : memref<128x32xbf16, #tpu.memory_space<vmem>>, vector<128x32xbf16>
    %cst = arith.constant dense<0.000000e+00> : vector<16x32xf32>
    %21 = tpu.matmul %19, %20, %cst {dimension_numbers = #tpu.dot_dimension_numbers<[1], [0], [0], [1], [0, 0, 1, 1], [], []>} : vector<16x128xbf16>, vector<128x32xbf16>, vector<16x32xf32> -> vector<16x32xf32>
    %c0_30 = arith.constant 0 : index
    %c0_31 = arith.constant 0 : index
    %22 = vector.load %arg3[%c0_30, %c0_31] : memref<1x32xf32, #tpu.memory_space<vmem>>, vector<1x32xf32>
    %23 = vector.broadcast %22 : vector<1x32xf32> to vector<16x32xf32>
    %24 = arith.addf %21, %23 : vector<16x32xf32>
    %25 = math.tanh %24 : vector<16x32xf32>
    %26 = arith.truncf %25 : vector<16x32xf32> to vector<16x32xbf16>
    %c0_32 = arith.constant 0 : index
    %c0_33 = arith.constant 0 : index
    %27 = vector.load %arg2[%c0_32, %c0_33] : memref<32x128xbf16, #tpu.memory_space<vmem>>, vector<32x128xbf16>
    %cst_34 = arith.constant dense<0.000000e+00> : vector<16x128xf32>
    %28 = tpu.matmul %26, %27, %cst_34 {dimension_numbers = #tpu.dot_dimension_numbers<[1], [0], [0], [1], [0, 0, 1, 1], [], []>} : vector<16x32xbf16>, vector<32x128xbf16>, vector<16x128xf32> -> vector<16x128xf32>
    %c0_35 = arith.constant 0 : index
    %c0_36 = arith.constant 0 : index
    %29 = vector.load %arg4[%c0_35, %c0_36] : memref<1x128xf32, #tpu.memory_space<vmem>>, vector<1x128xf32>
    %30 = vector.broadcast %29 : vector<1x128xf32> to vector<16x128xf32>
    %31 = arith.addf %28, %30 : vector<16x128xf32>
    %32 = vector.extract_strided_slice %31 {offsets = [0, 0], sizes = [8, 32], strides = [1, 1]} : vector<16x128xf32> to vector<8x32xf32>
    %c0_37 = arith.constant 0 : index
    %c0_38 = arith.constant 0 : index
    %c0_39 = arith.constant 0 : index
    %c0_40 = arith.constant 0 : index
    %33 = vector.load %arg5[%c0_37, %c0_38, %c0_39, %c0_40] : memref<2x4x8x32xf32, #tpu.memory_space<vmem>>, vector<1x1x8x32xf32>
    %34 = vector.shape_cast %33 : vector<1x1x8x32xf32> to vector<8x32xf32>
    %35 = vector.shape_cast %32 : vector<8x32xf32> to vector<1x1x8x32xf32>
    tpu.vector_store %arg5[%c0_37, %c0_38, %c0_39, %c0_40], %35 {strides = array<i32>} : memref<2x4x8x32xf32, #tpu.memory_space<vmem>>, vector<1x1x8x32xf32>,
    %36 = vector.extract_strided_slice %31 {offsets = [0, 32], sizes = [8, 32], strides = [1, 1]} : vector<16x128xf32> to vector<8x32xf32>
    %c0_41 = arith.constant 0 : index
    %c1_42 = arith.constant 1 : index
    %c0_43 = arith.constant 0 : index
    %c0_44 = arith.constant 0 : index
    %37 = vector.load %arg5[%c0_41, %c1_42, %c0_43, %c0_44] : memref<2x4x8x32xf32, #tpu.memory_space<vmem>>, vector<1x1x8x32xf32>
    %38 = vector.shape_cast %37 : vector<1x1x8x32xf32> to vector<8x32xf32>
    %39 = vector.shape_cast %36 : vector<8x32xf32> to vector<1x1x8x32xf32>
    tpu.vector_store %arg5[%c0_41, %c1_42, %c0_43, %c0_44], %39 {strides = array<i32>} : memref<2x4x8x32xf32, #tpu.memory_space<vmem>>, vector<1x1x8x32xf32>,
    %40 = vector.extract_strided_slice %31 {offsets = [0, 64], sizes = [8, 32], strides = [1, 1]} : vector<16x128xf32> to vector<8x32xf32>
    %c0_45 = arith.constant 0 : index
    %c2_46 = arith.constant 2 : index
    %c0_47 = arith.constant 0 : index
    %c0_48 = arith.constant 0 : index
    %41 = vector.load %arg5[%c0_45, %c2_46, %c0_47, %c0_48] : memref<2x4x8x32xf32, #tpu.memory_space<vmem>>, vector<1x1x8x32xf32>
    %42 = vector.shape_cast %41 : vector<1x1x8x32xf32> to vector<8x32xf32>
    %43 = vector.shape_cast %40 : vector<8x32xf32> to vector<1x1x8x32xf32>
    tpu.vector_store %arg5[%c0_45, %c2_46, %c0_47, %c0_48], %43 {strides = array<i32>} : memref<2x4x8x32xf32, #tpu.memory_space<vmem>>, vector<1x1x8x32xf32>,
    %44 = vector.extract_strided_slice %31 {offsets = [0, 96], sizes = [8, 32], strides = [1, 1]} : vector<16x128xf32> to vector<8x32xf32>
    %c0_49 = arith.constant 0 : index
    %c3_50 = arith.constant 3 : index
    %c0_51 = arith.constant 0 : index
    %c0_52 = arith.constant 0 : index
    %45 = vector.load %arg5[%c0_49, %c3_50, %c0_51, %c0_52] : memref<2x4x8x32xf32, #tpu.memory_space<vmem>>, vector<1x1x8x32xf32>
    %46 = vector.shape_cast %45 : vector<1x1x8x32xf32> to vector<8x32xf32>
    %47 = vector.shape_cast %44 : vector<8x32xf32> to vector<1x1x8x32xf32>
    tpu.vector_store %arg5[%c0_49, %c3_50, %c0_51, %c0_52], %47 {strides = array<i32>} : memref<2x4x8x32xf32, #tpu.memory_space<vmem>>, vector<1x1x8x32xf32>,
    %48 = vector.extract_strided_slice %31 {offsets = [8, 0], sizes = [8, 32], strides = [1, 1]} : vector<16x128xf32> to vector<8x32xf32>
    %c1_53 = arith.constant 1 : index
    %c0_54 = arith.constant 0 : index
    %c0_55 = arith.constant 0 : index
    %c0_56 = arith.constant 0 : index
    %49 = vector.load %arg5[%c1_53, %c0_54, %c0_55, %c0_56] : memref<2x4x8x32xf32, #tpu.memory_space<vmem>>, vector<1x1x8x32xf32>
    %50 = vector.shape_cast %49 : vector<1x1x8x32xf32> to vector<8x32xf32>
    %51 = vector.shape_cast %48 : vector<8x32xf32> to vector<1x1x8x32xf32>
    tpu.vector_store %arg5[%c1_53, %c0_54, %c0_55, %c0_56], %51 {strides = array<i32>} : memref<2x4x8x32xf32, #tpu.memory_space<vmem>>, vector<1x1x8x32xf32>,
    %52 = vector.extract_strided_slice %31 {offsets = [8, 32], sizes = [8, 32], strides = [1, 1]} : vector<16x128xf32> to vector<8x32xf32>
    %c1_57 = arith.constant 1 : index
    %c1_58 = arith.constant 1 : index
    %c0_59 = arith.constant 0 : index
    %c0_60 = arith.constant 0 : index
    %53 = vector.load %arg5[%c1_57, %c1_58, %c0_59, %c0_60] : memref<2x4x8x32xf32, #tpu.memory_space<vmem>>, vector<1x1x8x32xf32>
    %54 = vector.shape_cast %53 : vector<1x1x8x32xf32> to vector<8x32xf32>
    %55 = vector.shape_cast %52 : vector<8x32xf32> to vector<1x1x8x32xf32>
    tpu.vector_store %arg5[%c1_57, %c1_58, %c0_59, %c0_60], %55 {strides = array<i32>} : memref<2x4x8x32xf32, #tpu.memory_space<vmem>>, vector<1x1x8x32xf32>,
    %56 = vector.extract_strided_slice %31 {offsets = [8, 64], sizes = [8, 32], strides = [1, 1]} : vector<16x128xf32> to vector<8x32xf32>
    %c1_61 = arith.constant 1 : index
    %c2_62 = arith.constant 2 : index
    %c0_63 = arith.constant 0 : index
    %c0_64 = arith.constant 0 : index
    %57 = vector.load %arg5[%c1_61, %c2_62, %c0_63, %c0_64] : memref<2x4x8x32xf32, #tpu.memory_space<vmem>>, vector<1x1x8x32xf32>
    %58 = vector.shape_cast %57 : vector<1x1x8x32xf32> to vector<8x32xf32>
    %59 = vector.shape_cast %56 : vector<8x32xf32> to vector<1x1x8x32xf32>
    tpu.vector_store %arg5[%c1_61, %c2_62, %c0_63, %c0_64], %59 {strides = array<i32>} : memref<2x4x8x32xf32, #tpu.memory_space<vmem>>, vector<1x1x8x32xf32>,
    %60 = vector.extract_strided_slice %31 {offsets = [8, 96], sizes = [8, 32], strides = [1, 1]} : vector<16x128xf32> to vector<8x32xf32>
    %c1_65 = arith.constant 1 : index
    %c3_66 = arith.constant 3 : index
    %c0_67 = arith.constant 0 : index
    %c0_68 = arith.constant 0 : index
    %61 = vector.load %arg5[%c1_65, %c3_66, %c0_67, %c0_68] : memref<2x4x8x32xf32, #tpu.memory_space<vmem>>, vector<1x1x8x32xf32>
    %62 = vector.shape_cast %61 : vector<1x1x8x32xf32> to vector<8x32xf32>
    %63 = vector.shape_cast %60 : vector<8x32xf32> to vector<1x1x8x32xf32>
    tpu.vector_store %arg5[%c1_65, %c3_66, %c0_67, %c0_68], %63 {strides = array<i32>} : memref<2x4x8x32xf32, #tpu.memory_space<vmem>>, vector<1x1x8x32xf32>,
    return
  }
}

</mosaic_0001>

<llo_original>
// kernel: tpu_custom_call.1
$region0: #{tpu_custom_call.1}
  #allocation0 [shape = 'u32[]', space=smem, size = 0x4, offset = 0x4, fixed_abs, tag = 'smem constant byte address 0x4 - core index']
  #allocation1 [shape = 'u32[72,128]{1,0:T(1,128)}', space=vmem, size = 0x9000, scoped, tag = 'internal scratch']
  %s0 = inlined_call_operand.vmem [shape: f32[2,4,8,32], index: 0, kind: input, shape index: {}]
  %s1 = inlined_call_operand.vmem [shape: bf16[128,32], index: 1, kind: input, shape index: {}]
  %s2 = inlined_call_operand.vmem [shape: bf16[32,128], index: 2, kind: input, shape index: {}]
  %s3 = inlined_call_operand.vmem [shape: f32[1,32], index: 3, kind: input, shape index: {}]
  %s4 = inlined_call_operand.vmem [shape: f32[1,128], index: 4, kind: input, shape index: {}]
  %s5 = inlined_call_operand.hbm [shape: f32[2,4,8,32], index: 5, kind: output, shape index: {}]
  %s6 = sld [smem:[#allocation0]]
  $region30: #{tpu_custom_call.1} parent=0
    _
  %s8 = ssub.s32 1, %s6
  %s9 = scalar_select 0, %s8, %s6
  $region1: #{tpu_custom_call.1} parent=0
    #allocation2 [shape = 'u8[32768]{0}', space=vmem, size = 0x8000, scoped, tag = 'output window, operand 0, single buffered']
    #allocation3 [shape = 's32[1]{0}', space=sflag, size = 0x4, scoped, tag = 'scoped memory for tpu_custom_call.1']
    %10 = vsyncpa [#allocation3], 0
    // Predicated region
    $region2: #{tpu_custom_call.1} parent=1 // pred_check
      _
    $region3: #{tpu_custom_call.1} parent=1 // pred_check_branch
      %12 = sbr.rel (0) target = $region5
    $region4: #{tpu_custom_call.1} parent=1 // pred_region
      _
    $region5: #{tpu_custom_call.1} parent=1 // pred_fallthru
      _
    // Predicated region
    $region6: #{tpu_custom_call.1} parent=1 // pred_check
      _
    $region7: #{tpu_custom_call.1} parent=1 // pred_check_branch
      %14 = sbr.rel (0) target = $region9
    $region8: #{tpu_custom_call.1} parent=1 // pred_region
      _
    $region9: #{tpu_custom_call.1} parent=1 // pred_fallthru
      _
    // Predicated region
    $region10: #{tpu_custom_call.1} parent=1 // pred_check
      _
    $region11: #{tpu_custom_call.1} parent=1 // pred_check_branch
      %16 = sbr.rel (0) target = $region13
    $region12: #{tpu_custom_call.1} parent=1 // pred_region
      _
    $region13: #{tpu_custom_call.1} parent=1 // pred_fallthru
      _
    // Predicated region
    $region14: #{tpu_custom_call.1} parent=1 // pred_check
      _
    $region15: #{tpu_custom_call.1} parent=1 // pred_check_branch
      %18 = sbr.rel (0) target = $region17
    $region16: #{tpu_custom_call.1} parent=1 // pred_region
      _
    $region17: #{tpu_custom_call.1} parent=1 // pred_fallthru
      _
    // Predicated region
    $region18: #{tpu_custom_call.1} parent=1 // pred_check
      _
    $region19: #{tpu_custom_call.1} parent=1 // pred_check_branch
      %20 = sbr.rel (0) target = $region21
    $region20: #{tpu_custom_call.1} parent=1 // pred_region
      _
    $region21: #{tpu_custom_call.1} parent=1 // pred_fallthru
      _
    %v22 = vld [vmem:[%s0] sm:$0xff]
    %s23 = scalar_lea.vmem %s0, 8
    %v24 = vld [vmem:[%s23] sm:$0xff]
    %s25 = scalar_lea.vmem %s0, 16
    %v26 = vld [vmem:[%s25] sm:$0xff]
    %s27 = scalar_lea.vmem %s0, 24
    %v28 = vld [vmem:[%s27] sm:$0xff]
    %30 = vrot.lane.b32.xlu0 %v24, 32
    %v31 = vpop.permute.xlu0 %30
    %34 = vrot.lane.b32.xlu0 %v26, 64
    %v35 = vpop.permute.xlu0 %34
    %38 = vrot.lane.b32.xlu0 %v28, 96
    %v39 = vpop.permute.xlu0 %38
    %vm41 = vcmask 261120
    %v42 = vsel %vm41, %v22, %v31
    %vm43 = vcmask 523264
    %v44 = vsel %vm43, %v42, %v35
    %vm45 = vcmask 785408
    %v46 = vsel %vm45, %v44, %v39
    %s47 = scalar_lea.vmem %s0, 32
    %v48 = vld [vmem:[%s47] sm:$0xff]
    %s49 = scalar_lea.vmem %s0, 40
    %v50 = vld [vmem:[%s49] sm:$0xff]
    %s51 = scalar_lea.vmem %s0, 48
    %v52 = vld [vmem:[%s51] sm:$0xff]
    %s53 = scalar_lea.vmem %s0, 56
    %v54 = vld [vmem:[%s53] sm:$0xff]
    %56 = vrot.lane.b32.xlu0 %v50, 32
    %v57 = vpop.permute.xlu0 %56
    %60 = vrot.lane.b32.xlu0 %v52, 64
    %v61 = vpop.permute.xlu0 %60
    %64 = vrot.lane.b32.xlu0 %v54, 96
    %v65 = vpop.permute.xlu0 %64
    %v67 = vsel %vm41, %v48, %v57
    %v68 = vsel %vm43, %v67, %v61
    %v69 = vsel %vm45, %v68, %v65
    %v70 = vpack.c.bf16 %v69, %v46
    %v71 = vld [vmem:[%s1] sm:$0xf]
    %v72 = vld [vmem:[%s1 + $0x4] sm:$0xf]
    %v73 = vld [vmem:[%s1 + $0x8] sm:$0xf]
    %v74 = vld [vmem:[%s1 + $0xc] sm:$0xf]
    %v75 = vld [vmem:[%s1 + $0x10] sm:$0xf]
    %v76 = vld [vmem:[%s1 + $0x14] sm:$0xf]
    %v77 = vld [vmem:[%s1 + $0x18] sm:$0xf]
    %v78 = vld [vmem:[%s1 + $0x1c] sm:$0xf]
    %v79 = vld [vmem:[%s1 + $0x20] sm:$0xf]
    %v80 = vld [vmem:[%s1 + $0x24] sm:$0xf]
    %v81 = vld [vmem:[%s1 + $0x28] sm:$0xf]
    %v82 = vld [vmem:[%s1 + $0x2c] sm:$0xf]
    %v83 = vld [vmem:[%s1 + $0x30] sm:$0xf]
    %v84 = vld [vmem:[%s1 + $0x34] sm:$0xf]
    %v85 = vld [vmem:[%s1 + $0x38] sm:$0xf]
    %v86 = vld [vmem:[%s1 + $0x3c] sm:$0xf]
    %v87 = vld [vmem:[%s3] sm:$0x1]
    %v89 = vperm.slane %v87, 0
    %v107 = vunpack.c.l.b16 %v71
    %v108 = vunpack.c.l.b16 %v72
    %v109 = vunpack.c.l.b16 %v73
    %v110 = vunpack.c.l.b16 %v74
    %v111 = vunpack.c.l.b16 %v75
    %v112 = vunpack.c.l.b16 %v76
    %v113 = vunpack.c.l.b16 %v77
    %v114 = vunpack.c.l.b16 %v78
    %v115 = vunpack.c.l.b16 %v79
    %v116 = vunpack.c.l.b16 %v80
    %v117 = vunpack.c.l.b16 %v81
    %v118 = vunpack.c.l.b16 %v82
    %v119 = vunpack.c.l.b16 %v83
    %v120 = vunpack.c.l.b16 %v84
    %v121 = vunpack.c.l.b16 %v85
    %v122 = vunpack.c.l.b16 %v86
    %v123 = vpack.c.b16 %v108, %v107
    %v124 = vpack.c.b16 %v110, %v109
    %v125 = vpack.c.b16 %v112, %v111
    %v126 = vpack.c.b16 %v114, %v113
    %v127 = vpack.c.b16 %v116, %v115
    %v128 = vpack.c.b16 %v118, %v117
    %v129 = vpack.c.b16 %v120, %v119
    %v130 = vpack.c.b16 %v122, %v121
    %139 = vmatpush.bf16.msra.mxu0 %v130
    %140 = vmatpush.bf16.msra.mxu0 %v129
    %141 = vmatpush.bf16.msra.mxu0 %v128
    %142 = vmatpush.bf16.msra.mxu0 %v127
    %143 = vmatpush.bf16.msra.mxu0 %v126
    %144 = vmatpush.bf16.msra.mxu0 %v125
    %145 = vmatpush.bf16.msra.mxu0 %v124
    %146 = vmatpush.bf16.msra.mxu0 %v123
    %147 = vmatmul.bf16.gmra.mxu0 %v70
    %v148 = vpop.f32.mrf.mxu0
    %v149 = vadd.f32 %v89, %v148
    %v150 = vpop.f32.mrf.mxu0
    %v151 = vadd.f32 %v89, %v150
    %152 = vdwg.mxu0
    %v153 = vtanh.pop %v149
    %v154 = vtanh.pop %v151
    %v155 = vpack.c.bf16 %v154, %v153
    %v156 = vld [vmem:[%s2] sm:$0xf]
    %v157 = vld [vmem:[%s2 + $0x4] sm:$0xf]
    %v158 = vld [vmem:[%s2 + $0x8] sm:$0xf]
    %v159 = vld [vmem:[%s2 + $0xc] sm:$0xf]
    %v160 = vld [vmem:[%s4] sm:$0x1]
    %v162 = vperm.slane %v160, 0
    %v168 = vunpack.c.l.b16 %v156
    %v169 = vunpack.c.l.b16 %v157
    %v170 = vunpack.c.l.b16 %v158
    %v171 = vunpack.c.l.b16 %v159
    %v172 = vpack.c.b16 %v169, %v168
    %v173 = vpack.c.b16 %v171, %v170
    %v177 = vsel %vm41, %v155, 0
    %179 = vmatpush.bf16.msra.mxu0 0
    %180 = vmatpush.bf16.msra.mxu0 0
    %181 = vmatpush.bf16.msra.mxu0 0
    %182 = vmatpush.bf16.msra.mxu0 0
    %183 = vmatpush.bf16.msra.mxu0 0
    %184 = vmatpush.bf16.msra.mxu0 0
    %185 = vmatpush.bf16.msra.mxu0 %v173
    %186 = vmatpush.bf16.msra.mxu0 %v172
    %187 = vmatmul.bf16.gmra.mxu0 %v177
    %v188 = vpop.f32.mrf.mxu0
    %v189 = vadd.f32 %v162, %v188
    %v190 = vpop.f32.mrf.mxu0
    %v191 = vadd.f32 %v162, %v190
    %192 = vdwg.mxu0
    %193 = vst.msk [vmem:[#allocation2] sm:$0xff] %vm41, %v189
    %195 = vrot.lane.b32.xlu0 %v189, 96
    %v196 = vpop.permute.xlu0 %195
    %s198 = scalar_lea.vmem [#allocation2], 8
    %199 = vst.msk [vmem:[%s198] sm:$0xff] %vm41, %v196
    %200 = vrot.lane.b32.xlu0 %v189, 64
    %v201 = vpop.permute.xlu0 %200
    %s203 = scalar_lea.vmem [#allocation2], 16
    %204 = vst.msk [vmem:[%s203] sm:$0xff] %vm41, %v201
    %205 = vrot.lane.b32.xlu0 %v189, 32
    %v206 = vpop.permute.xlu0 %205
    %s208 = scalar_lea.vmem [#allocation2], 24
    %209 = vst.msk [vmem:[%s208] sm:$0xff] %vm41, %v206
    %s210 = scalar_lea.vmem [#allocation2], 32
    %211 = vst.msk [vmem:[%s210] sm:$0xff] %vm41, %v191
    %213 = vrot.lane.b32.xlu0 %v191, 96
    %v214 = vpop.permute.xlu0 %213
    %s216 = scalar_lea.vmem [#allocation2], 40
    %217 = vst.msk [vmem:[%s216] sm:$0xff] %vm41, %v214
    %218 = vrot.lane.b32.xlu0 %v191, 64
    %v219 = vpop.permute.xlu0 %218
    %s221 = scalar_lea.vmem [#allocation2], 48
    %222 = vst.msk [vmem:[%s221] sm:$0xff] %vm41, %v219
    %223 = vrot.lane.b32.xlu0 %v191, 32
    %v224 = vpop.permute.xlu0 %223
    %s226 = scalar_lea.vmem [#allocation2], 56
    %227 = vst.msk [vmem:[%s226] sm:$0xff] %vm41, %v224
    // Predicated region
    $region22: #{tpu_custom_call.1} parent=1 // pred_check
      _
    $region23: #{tpu_custom_call.1} parent=1 // pred_check_branch
      %229 = sbr.rel (0) target = $region25
    $region24: #{tpu_custom_call.1} parent=1 // pred_region
      %231 = vsyncadd [#allocation3], 0
      %s232 = sshll.u32 [#allocation2], 4
      %s233 = int_to_ptr.vmem [resolvable:$true] %s232
      %s234 = sshll.u32 %s5, 4
      %s235 = int_to_ptr.hbm [resolvable:$true] %s234
      %240 = dma.vmem_to_hbm [thread:$0]  %s233, 1024, %s235, [#allocation3], 128, 128, 8
    $region25: #{tpu_custom_call.1} parent=1 // pred_fallthru
      _
    // Predicated region
    $region26: #{tpu_custom_call.1} parent=1 // pred_check
      _
    $region27: #{tpu_custom_call.1} parent=1 // pred_check_branch
      %242 = sbr.rel (0) target = $region29
    $region28: #{tpu_custom_call.1} parent=1 // pred_region
      %244 = dma.done [#allocation3], 1024
    $region29: #{tpu_custom_call.1} parent=1 // pred_fallthru
      _
    %245 = vsyncpa [#allocation3], 1

</llo_original>
